<compile_context>
chip_gen: v7x
topology: tpu7x:2x2x1
jax: 0.10.0
libtpu: 0.0.40
codegen_flags: <defaults>
</compile_context>

<pallas_src>
import jax
import jax.numpy as jnp
from jax.experimental import pallas as pl
from jax.experimental.pallas import tpu as pltpu

# ---------------------------------------------------------------------------
# Small shapes consistent with the module's forward pass
# ---------------------------------------------------------------------------
B = 2     # batch
S = 8     # sequence length
D = 32    # d_model
V = 512   # vocab_size (multiple of 128 -> lane-dense output stores)


# ---------------------------------------------------------------------------
# Fused projection + online log-softmax kernel
# Grid = (token_blocks, 2 passes, vocab_blocks)
#   pass p == 0 : accumulate online-softmax stats (m, l) across vocab tiles
#   pass p == 1 : recompute the tile's logits, write logits - (m + log(l))
# ---------------------------------------------------------------------------
def projection_kernel(x_ref, w_ref, b_ref, out_ref, m_ref, l_ref):
    p = pl.program_id(1)
    j = pl.program_id(2)

    @pl.when((p == 0) & (j == 0))
    def _init():
        m_ref[...] = jnp.full(m_ref.shape, -jnp.inf, m_ref.dtype)
        l_ref[...] = jnp.zeros(l_ref.shape, l_ref.dtype)

    # bf16 x bf16 -> f32 accumulation on the MXU; bias add in f32.
    logits = jnp.dot(x_ref[...], w_ref[...],
                     preferred_element_type=jnp.float32) + b_ref[...]

    @pl.when(p == 0)
    def _stats():
        m_prev = m_ref[...]
        m_new = jnp.maximum(m_prev, jnp.max(logits, axis=-1, keepdims=True))
        l_ref[...] = (l_ref[...] * jnp.exp(m_prev - m_new)
                      + jnp.sum(jnp.exp(logits - m_new), axis=-1, keepdims=True))
        m_ref[...] = m_new

    @pl.when(p == 1)
    def _write():
        lse = m_ref[...] + jnp.log(l_ref[...])
        out_ref[...] = (logits - lse).astype(out_ref.dtype)


# ---------------------------------------------------------------------------
# Wrapper: flatten (..., D) -> (n_tok, D); grid over (token, pass, vocab)
# ---------------------------------------------------------------------------
def projection_layer(x, w, b, *, tok_tile=None, v_tile=None,
                     out_dtype=jnp.float32):
    """log_softmax(x @ w + b, axis=-1).

    x : (..., d_model)         any float dtype (cast to bf16 for the MXU)
    w : (d_model, vocab_size)  NOTE: transposed vs. torch nn.Linear's (V, D)
    b : (vocab_size,) or (1, vocab_size)
    out_dtype : jnp.float32 by default; pass jnp.bfloat16 to halve write-back.
    """
    lead = x.shape[:-1]
    d = x.shape[-1]
    assert w.ndim == 2 and w.shape[0] == d, (
        "weight must be (d_model, vocab_size); transpose torch's (V, D) layout")
    v = w.shape[1]

    x2 = x.reshape(-1, d).astype(jnp.bfloat16)
    w2 = w.astype(jnp.bfloat16)
    b2 = b.reshape(1, v).astype(jnp.float32)
    n_tok = x2.shape[0]

    if tok_tile is None:
        tok_tile = n_tok                  # one token block at toy sizes
    if v_tile is None:
        v_tile = min(v, 1024)

    assert n_tok % tok_tile == 0
    # bf16 sublane packing -> keep token tiles 16-aligned unless full-extent.
    assert tok_tile == n_tok or tok_tile % 16 == 0
    assert v % v_tile == 0
    assert v_tile == v or v_tile % 128 == 0

    grid = (n_tok // tok_tile, 2, v // v_tile)

    # Explicit VMEM budget (double-buffered inputs/outputs + lane-padded scratch),
    # never below the 32 MiB scoped default.
    out_bytes = jnp.dtype(out_dtype).itemsize
    est = (2 * (tok_tile * d * 2)                 # x block
           + 2 * (d * v_tile * 2)                 # weight tile
           + 2 * (v_tile * 4)                     # bias tile
           + 2 * (tok_tile * v_tile * out_bytes)  # output tile
           + 2 * (tok_tile * 128 * 4))            # m, l scratch
    vmem_limit = min(max(2 * est + (4 << 20), 32 << 20), 100 << 20)

    out = pl.pallas_call(
        projection_kernel,
        out_shape=jax.ShapeDtypeStruct((n_tok, v), out_dtype),
        grid_spec=pltpu.PrefetchScalarGridSpec(
            num_scalar_prefetch=0,
            grid=grid,
            in_specs=[
                # activations: resident across the pass / vocab axes
                pl.BlockSpec((tok_tile, d), lambda i, p, j: (i, 0)),
                # weight tile: streamed along the vocab axis (both passes)
                pl.BlockSpec((d, v_tile), lambda i, p, j: (0, j)),
                # bias tile
                pl.BlockSpec((1, v_tile), lambda i, p, j: (0, j)),
            ],
            # During the stats pass (p == 0) park on block (i, 0); blocks are
            # only actually written (exactly once each) during p == 1.
            out_specs=pl.BlockSpec((tok_tile, v_tile),
                                   lambda i, p, j: (i, j * p)),
            scratch_shapes=[
                pltpu.VMEM((tok_tile, 1), jnp.float32),   # running max m
                pltpu.VMEM((tok_tile, 1), jnp.float32),   # running sum l
            ],
        ),
        compiler_params=pltpu.CompilerParams(
            dimension_semantics=("parallel", "arbitrary", "arbitrary"),
            vmem_limit_bytes=vmem_limit),
    )(x2, w2, b2)
    return out.reshape(*lead, v)


# ---------------------------------------------------------------------------
# Pure-JAX reference
# ---------------------------------------------------------------------------
def reference(x, w, b):
    logits = x @ w + b.reshape(1, -1)
    return jax.nn.log_softmax(logits, axis=-1)


# ---------------------------------------------------------------------------
if __name__ == "__main__":
    key = jax.random.PRNGKey(0)
    kx, kw, kb = jax.random.split(key, 3)

    x = jax.random.normal(kx, (B, S, D), jnp.float32)
    # torch nn.Linear(d_model, vocab) weight is (V, D); pre-transposed to (D, V)
    w = 0.1 * jax.random.normal(kw, (D, V), jnp.float32)
    b = 0.1 * jax.random.normal(kb, (V,), jnp.float32)

    # v_tile=128 -> 4 vocab tiles: exercises the online log-softmax path.
    out = projection_layer(x, w, b, v_tile=128)
    out = jax.block_until_ready(out)
    assert out.shape == (B, S, V)

    # Tight check against a reference using the same bf16 operand cast ...
    xb = x.astype(jnp.bfloat16).astype(jnp.float32)
    wb = w.astype(jnp.bfloat16).astype(jnp.float32)
    ref_bf16 = reference(xb, wb, b)
    assert jnp.allclose(out, ref_bf16, atol=2e-3, rtol=2e-3), (
        float(jnp.max(jnp.abs(out - ref_bf16))))
    # ... and a loose check against the exact f32 module semantics.
    ref_f32 = reference(x, w, b)
    assert jnp.allclose(out, ref_f32, atol=5e-2, rtol=5e-2), (
        float(jnp.max(jnp.abs(out - ref_f32))))

    print("KERNEL_OK")
</pallas_src>

<mosaic_0001>
module attributes {stable_mosaic.version = 11 : i64} {
  func.func @projection_kernel(%arg0: i32, %arg1: i32, %arg2: i32, %arg3: memref<16x32xbf16, #tpu.memory_space<vmem>>, %arg4: memref<32x128xbf16, #tpu.memory_space<vmem>>, %arg5: memref<1x128xf32, #tpu.memory_space<vmem>>, %arg6: memref<16x128xf32, #tpu.memory_space<vmem>>, %arg7: memref<16x1xf32, #tpu.memory_space<vmem>>, %arg8: memref<16x1xf32, #tpu.memory_space<vmem>>) attributes {dimension_semantics = [#tpu.dimension_semantics<parallel>, #tpu.dimension_semantics<arbitrary>, #tpu.dimension_semantics<arbitrary>], iteration_bounds = array<i64: 1, 2, 4>, scalar_prefetch = 0 : i64, scratch_operands = 2 : i64, tpu.core_type = #tpu.core_type<tc>, window_params = [{transform_indices = @transform_0, window_bounds = array<i64: 16, 32>}, {transform_indices = @transform_1, window_bounds = array<i64: 32, 128>}, {transform_indices = @transform_2, window_bounds = array<i64: 1, 128>}, {transform_indices = @transform_3, window_bounds = array<i64: 16, 128>}]} {
    %c0_i32 = arith.constant 0 : i32
    %0 = arith.cmpi eq, %arg1, %c0_i32 : i32
    %c0_i32_0 = arith.constant 0 : i32
    %1 = arith.cmpi eq, %arg2, %c0_i32_0 : i32
    %2 = arith.andi %0, %1 : i1
    %3 = arith.extui %2 : i1 to i32
    %c0_i32_1 = arith.constant 0 : i32
    %4 = arith.cmpi ne, %3, %c0_i32_1 : i32
    scf.if %4 {
      %cst_10 = arith.constant 0xFF800000 : f32
      %17 = vector.broadcast %cst_10 : f32 to vector<16x1xf32>
      %c0_11 = arith.constant 0 : index
      %c0_12 = arith.constant 0 : index
      %18 = vector.load %arg7[%c0_11, %c0_12] : memref<16x1xf32, #tpu.memory_space<vmem>>, vector<16x1xf32>
      tpu.vector_store %arg7[%c0_11, %c0_12], %17 {strides = array<i32>} : memref<16x1xf32, #tpu.memory_space<vmem>>, vector<16x1xf32>,
      %cst_13 = arith.constant 0.000000e+00 : f32
      %19 = vector.broadcast %cst_13 : f32 to vector<16x1xf32>
      %c0_14 = arith.constant 0 : index
      %c0_15 = arith.constant 0 : index
      %20 = vector.load %arg8[%c0_14, %c0_15] : memref<16x1xf32, #tpu.memory_space<vmem>>, vector<16x1xf32>
      tpu.vector_store %arg8[%c0_14, %c0_15], %19 {strides = array<i32>} : memref<16x1xf32, #tpu.memory_space<vmem>>, vector<16x1xf32>,
    } else {
    }
    %c0 = arith.constant 0 : index
    %c0_2 = arith.constant 0 : index
    %5 = vector.load %arg3[%c0, %c0_2] : memref<16x32xbf16, #tpu.memory_space<vmem>>, vector<16x32xbf16>
    %c0_3 = arith.constant 0 : index
    %c0_4 = arith.constant 0 : index
    %6 = vector.load %arg4[%c0_3, %c0_4] : memref<32x128xbf16, #tpu.memory_space<vmem>>, vector<32x128xbf16>
    %cst = arith.constant dense<0.000000e+00> : vector<16x128xf32>
    %7 = tpu.matmul %5, %6, %cst {dimension_numbers = #tpu.dot_dimension_numbers<[1], [0], [0], [1], [0, 0, 1, 1], [], []>} : vector<16x32xbf16>, vector<32x128xbf16>, vector<16x128xf32> -> vector<16x128xf32>
    %c0_5 = arith.constant 0 : index
    %c0_6 = arith.constant 0 : index
    %8 = vector.load %arg5[%c0_5, %c0_6] : memref<1x128xf32, #tpu.memory_space<vmem>>, vector<1x128xf32>
    %9 = vector.broadcast %8 : vector<1x128xf32> to vector<16x128xf32>
    %10 = arith.addf %7, %9 : vector<16x128xf32>
    %c0_i32_7 = arith.constant 0 : i32
    %11 = arith.cmpi eq, %arg1, %c0_i32_7 : i32
    %12 = arith.extui %11 : i1 to i32
    %c0_i32_8 = arith.constant 0 : i32
    %13 = arith.cmpi ne, %12, %c0_i32_8 : i32
    scf.if %13 {
      %c0_10 = arith.constant 0 : index
      %c0_11 = arith.constant 0 : index
      %17 = vector.load %arg7[%c0_10, %c0_11] : memref<16x1xf32, #tpu.memory_space<vmem>>, vector<16x1xf32>
      %cst_12 = arith.constant dense<0xFF800000> : vector<16xf32>
      %18 = vector.multi_reduction <maximumf>, %10, %cst_12 [1] : vector<16x128xf32> to vector<16xf32>
      %19 = vector.shape_cast %18 : vector<16xf32> to vector<16x1xf32>
      %20 = arith.maximumf %17, %19 : vector<16x1xf32>
      %c0_13 = arith.constant 0 : index
      %c0_14 = arith.constant 0 : index
      %21 = vector.load %arg8[%c0_13, %c0_14] : memref<16x1xf32, #tpu.memory_space<vmem>>, vector<16x1xf32>
      %22 = arith.subf %17, %20 : vector<16x1xf32>
      %23 = math.exp %22 : vector<16x1xf32>
      %24 = arith.mulf %21, %23 : vector<16x1xf32>
      %25 = vector.broadcast %20 : vector<16x1xf32> to vector<16x128xf32>
      %26 = arith.subf %10, %25 : vector<16x128xf32>
      %27 = math.exp %26 : vector<16x128xf32>
      %cst_15 = arith.constant dense<0.000000e+00> : vector<16xf32>
      %28 = vector.multi_reduction <add>, %27, %cst_15 [1] : vector<16x128xf32> to vector<16xf32>
      %29 = vector.shape_cast %28 : vector<16xf32> to vector<16x1xf32>
      %30 = arith.addf %24, %29 : vector<16x1xf32>
      %c0_16 = arith.constant 0 : index
      %c0_17 = arith.constant 0 : index
      %31 = vector.load %arg8[%c0_16, %c0_17] : memref<16x1xf32, #tpu.memory_space<vmem>>, vector<16x1xf32>
      tpu.vector_store %arg8[%c0_16, %c0_17], %30 {strides = array<i32>} : memref<16x1xf32, #tpu.memory_space<vmem>>, vector<16x1xf32>,
      %c0_18 = arith.constant 0 : index
      %c0_19 = arith.constant 0 : index
      %32 = vector.load %arg7[%c0_18, %c0_19] : memref<16x1xf32, #tpu.memory_space<vmem>>, vector<16x1xf32>
      tpu.vector_store %arg7[%c0_18, %c0_19], %20 {strides = array<i32>} : memref<16x1xf32, #tpu.memory_space<vmem>>, vector<16x1xf32>,
    } else {
    }
    %c1_i32 = arith.constant 1 : i32
    %14 = arith.cmpi eq, %arg1, %c1_i32 : i32
    %15 = arith.extui %14 : i1 to i32
    %c0_i32_9 = arith.constant 0 : i32
    %16 = arith.cmpi ne, %15, %c0_i32_9 : i32
    scf.if %16 {
      %c0_10 = arith.constant 0 : index
      %c0_11 = arith.constant 0 : index
      %17 = vector.load %arg7[%c0_10, %c0_11] : memref<16x1xf32, #tpu.memory_space<vmem>>, vector<16x1xf32>
      %c0_12 = arith.constant 0 : index
      %c0_13 = arith.constant 0 : index
      %18 = vector.load %arg8[%c0_12, %c0_13] : memref<16x1xf32, #tpu.memory_space<vmem>>, vector<16x1xf32>
      %19 = math.log %18 : vector<16x1xf32>
      %20 = arith.addf %17, %19 : vector<16x1xf32>
      %21 = vector.broadcast %20 : vector<16x1xf32> to vector<16x128xf32>
      %22 = arith.subf %10, %21 : vector<16x128xf32>
      %c0_14 = arith.constant 0 : index
      %c0_15 = arith.constant 0 : index
      %23 = vector.load %arg6[%c0_14, %c0_15] : memref<16x128xf32, #tpu.memory_space<vmem>>, vector<16x128xf32>
      tpu.vector_store %arg6[%c0_14, %c0_15], %22 {strides = array<i32>} : memref<16x128xf32, #tpu.memory_space<vmem>>, vector<16x128xf32>,
    } else {
    }
    return
  }
  func.func @transform_0(%arg0: i32, %arg1: i32, %arg2: i32) -> (i32, i32) {
    %c0_i32 = arith.constant 0 : i32
    %c0_i32_0 = arith.constant 0 : i32
    return %arg0, %c0_i32 : i32, i32
  }
  func.func @transform_1(%arg0: i32, %arg1: i32, %arg2: i32) -> (i32, i32) {
    %c0_i32 = arith.constant 0 : i32
    %c0_i32_0 = arith.constant 0 : i32
    return %c0_i32, %arg2 : i32, i32
  }
  func.func @transform_2(%arg0: i32, %arg1: i32, %arg2: i32) -> (i32, i32) {
    %c0_i32 = arith.constant 0 : i32
    %c0_i32_0 = arith.constant 0 : i32
    return %c0_i32, %arg2 : i32, i32
  }
  func.func @transform_3(%arg0: i32, %arg1: i32, %arg2: i32) -> (i32, i32) {
    %0 = arith.muli %arg2, %arg1 : i32
    %c0_i32 = arith.constant 0 : i32
    return %arg0, %0 : i32, i32
  }
}

</mosaic_0001>

<llo_original>
// kernel: tpu_custom_call.1
$region0: #{tpu_custom_call.1}
  #allocation0 [shape = 'u32[]', space=smem, size = 0x4, offset = 0x4, fixed_abs, tag = 'smem constant byte address 0x4 - core index']
  #allocation1 [shape = 'u32[144,128]{1,0:T(1,128)}', space=vmem, size = 0x12000, scoped, tag = 'internal scratch']
  #allocation2 [shape = 'f32[16,1]{1,0:T(8,128)}', space=vmem, size = 0x2000, scoped, tag = 'scratch operand']
  #allocation3 [shape = 'f32[16,1]{1,0:T(8,128)}', space=vmem, size = 0x2000, scoped, tag = 'scratch operand']
  %s0 = inlined_call_operand.hbm [shape: bf16[16,32], index: 0, kind: input, shape index: {}]
  %s1 = inlined_call_operand.hbm [shape: bf16[32,512], index: 1, kind: input, shape index: {}]
  %s2 = inlined_call_operand.vmem [shape: f32[1,512], index: 2, kind: input, shape index: {}]
  %s3 = inlined_call_operand.hbm [shape: f32[16,512], index: 3, kind: output, shape index: {}]
  %s4 = sld [smem:[#allocation0]]
  $region65: #{tpu_custom_call.1} parent=0
    _
  %s6 = ssub.s32 1, %s4
  %s7 = scalar_select 0, %s6, %s4
  $region1: #{tpu_custom_call.1} parent=0
    #allocation4 [shape = 'u8[4096]{0}', space=vmem, size = 0x1000, scoped, tag = 'input window, operand 0, single buffered']
    #allocation5 [shape = 's32[2]{0}', space=sflag, size = 0x8, scoped, tag = 'scoped memory for tpu_custom_call.1']
    #allocation6 [shape = 's32[2]{0}', space=sflag, size = 0x8, scoped, tag = 'scoped memory for tpu_custom_call.1']
    #allocation7 [shape = 'u8[16384]{0}', space=vmem, size = 0x4000, scoped, tag = 'input window, operand 1']
    #allocation8 [shape = 's32[2]{0}', space=sflag, size = 0x8, scoped, tag = 'scoped memory for tpu_custom_call.1']
    #allocation9 [shape = 'u8[16384]{0}', space=vmem, size = 0x4000, scoped, tag = 'output window, operand 0']
    %8 = vsyncpa [#allocation5], 0
    %9 = vsyncpa [#allocation8], 0
    %s10 = scalar_lea.sflag [#allocation8], 1
    %11 = vsyncpa %s10, 0
    %12 = vsyncpa [#allocation6], 0
    %s13 = scalar_lea.sflag [#allocation6], 1
    %14 = vsyncpa %s13, 0
    loop: start=0, step=1, limit=10
    $region2: #{tpu_custom_call.1} parent=1 // loop_pre_header
      _
    $region3: #{tpu_custom_call.1} parent=1 // loop_header
      %s16 = sphi 0, %s20
      %p17 = scmp.ge.s32.totalorder %s16, 10
      %s23 = sphi 0, %s42
      %s24 = sphi 0, %s38
      %s25 = sphi 0, %s34
      %s26 = sphi 0, %s23
      %s27 = sphi 0, %s24
      %s28 = sphi 0, %s25
      %s29 = sphi 0, %s26
      %s30 = sphi 0, %s27
      %s31 = sphi 0, %s28
      %s45 = sphi 0, %s47
      %s48 = sphi 0, %s45
      %s49 = sphi 0, %s48
      %s65 = sphi 0, %s49
      %s71 = sphi 0, %s73
      %s74 = sphi 0, %s71
      %s75 = sphi 0, %s74
      %s91 = sphi 0, %s75
      %s97 = sphi 0, %s99
      %s100 = sphi 0, %s97
      %s101 = sphi 0, %s100
      %s117 = sphi 0, %s101
      %s127 = sphi 0, %s129
      %s130 = sphi 0, %s127
      %s131 = sphi 0, %s130
      %s147 = sphi 0, %s131
    $region4: #{tpu_custom_call.1} parent=1 // loop_header_branch
      %19 = sbr.rel (%p17) target = $region8
    $region5: #{tpu_custom_call.1} parent=1 // loop_body
      %s21 = ssub.s32 %s16, 1
      %s22 = ssub.s32 %s16, 2
      %s32 = sadd.s32 1, %s25
      %p33 = scmp.ge.s32.totalorder %s32, 4
      %s34 = scalar_select %p33, 0, %s32
      %s35 = sadd.s32 1, %s24
      %s36 = scalar_select %p33, %s35, %s24
      %p37 = scmp.ge.s32.totalorder %s36, 2
      %s38 = scalar_select %p37, 0, %s36
      %s39 = sadd.s32 1, %s23
      %s40 = scalar_select %p37, %s39, %s23
      %p41 = scmp.ge.s32.totalorder %s40, 1
      %s42 = scalar_select %p41, 0, %s40
      %s43 = ssub.s32 %s23, %s42
      %p44 = scmp.eq.s32.totalorder %s43, 0
      %s46 = sadd.s32 %s45, 1
      %s47 = scalar_select %p44, %s45, %s46
      %p50 = pneg %p44
      %p51 = scmp.eq.s32.totalorder %s16, 7
      %p52 = por %p50, %p51
      %p53 = scmp.ne.s32.totalorder %s45, %s48
      %p54 = scmp.eq.s32.totalorder %s16, 0
      %p55 = por %p53, %p54
      %p56 = scmp.ne.s32.totalorder %s45, %s48
      %p57 = scmp.eq.s32.totalorder %s21, 7
      %p58 = por %p56, %p57
      %p59 = scmp.ne.s32.totalorder %s48, %s49
      %p60 = scmp.eq.s32.totalorder %s21, 0
      %p61 = por %p59, %p60
      %p62 = scmp.ne.s32.totalorder %s48, %s49
      %p63 = scmp.eq.s32.totalorder %s22, 7
      %p64 = por %p62, %p63
      %p66 = scmp.ne.s32.totalorder %s49, %s65
      %p67 = scmp.eq.s32.totalorder %s22, 0
      %p68 = por %p66, %p67
      %s69 = ssub.s32 %s25, %s34
      %p70 = scmp.eq.s32.totalorder %s69, 0
      %s72 = sadd.s32 %s71, 1
      %s73 = scalar_select %p70, %s71, %s72
      %p76 = pneg %p70
      %p77 = scmp.eq.s32.totalorder %s16, 7
      %p78 = por %p76, %p77
      %p79 = scmp.ne.s32.totalorder %s71, %s74
      %p80 = scmp.eq.s32.totalorder %s16, 0
      %p81 = por %p79, %p80
      %p82 = scmp.ne.s32.totalorder %s71, %s74
      %p83 = scmp.eq.s32.totalorder %s21, 7
      %p84 = por %p82, %p83
      %p85 = scmp.ne.s32.totalorder %s74, %s75
      %p86 = scmp.eq.s32.totalorder %s21, 0
      %p87 = por %p85, %p86
      %p88 = scmp.ne.s32.totalorder %s74, %s75
      %p89 = scmp.eq.s32.totalorder %s22, 7
      %p90 = por %p88, %p89
      %p92 = scmp.ne.s32.totalorder %s75, %s91
      %p93 = scmp.eq.s32.totalorder %s22, 0
      %p94 = por %p92, %p93
      %s95 = ssub.s32 %s25, %s34
      %p96 = scmp.eq.s32.totalorder %s95, 0
      %s98 = sadd.s32 %s97, 1
      %s99 = scalar_select %p96, %s97, %s98
      %p102 = pneg %p96
      %p103 = scmp.eq.s32.totalorder %s16, 7
      %p104 = por %p102, %p103
      %p105 = scmp.ne.s32.totalorder %s97, %s100
      %p106 = scmp.eq.s32.totalorder %s16, 0
      %p107 = por %p105, %p106
      %p108 = scmp.ne.s32.totalorder %s97, %s100
      %p109 = scmp.eq.s32.totalorder %s21, 7
      %p110 = por %p108, %p109
      %p111 = scmp.ne.s32.totalorder %s100, %s101
      %p112 = scmp.eq.s32.totalorder %s21, 0
      %p113 = por %p111, %p112
      %p114 = scmp.ne.s32.totalorder %s100, %s101
      %p115 = scmp.eq.s32.totalorder %s22, 7
      %p116 = por %p114, %p115
      %p118 = scmp.ne.s32.totalorder %s101, %s117
      %p119 = scmp.eq.s32.totalorder %s22, 0
      %p120 = por %p118, %p119
      %s121 = smul.u32 %s25, %s24
      %s122 = smul.u32 %s34, %s38
      %s123 = ssub.s32 %s23, %s42
      %s124 = ssub.s32 %s121, %s122
      %s125 = sor.u32 %s123, %s124
      %p126 = scmp.eq.s32.totalorder %s125, 0
      %s128 = sadd.s32 %s127, 1
      %s129 = scalar_select %p126, %s127, %s128
      %p132 = pneg %p126
      %p133 = scmp.eq.s32.totalorder %s16, 7
      %p134 = por %p132, %p133
      %p135 = scmp.ne.s32.totalorder %s127, %s130
      %p136 = scmp.eq.s32.totalorder %s16, 0
      %p137 = por %p135, %p136
      %p138 = scmp.ne.s32.totalorder %s127, %s130
      %p139 = scmp.eq.s32.totalorder %s21, 7
      %p140 = por %p138, %p139
      %p141 = scmp.ne.s32.totalorder %s130, %s131
      %p142 = scmp.eq.s32.totalorder %s21, 0
      %p143 = por %p141, %p142
      %p144 = scmp.ne.s32.totalorder %s130, %s131
      %p145 = scmp.eq.s32.totalorder %s22, 7
      %p146 = por %p144, %p145
      %p148 = scmp.ne.s32.totalorder %s131, %s147
      %p149 = scmp.eq.s32.totalorder %s22, 0
      %p150 = por %p148, %p149
      %p151 = scmp.le.s32.totalorder 1, %s16
      %p152 = scmp.lt.s32.totalorder %s16, 9
      %p153 = pnand %p151, %p152
      %p154 = pneg %p153
      // Predicated region
      $region9: #{tpu_custom_call.1} parent=5 // pred_check
        _
      $region10: #{tpu_custom_call.1} parent=5 // pred_check_branch
        %156 = sbr.rel (%p153) target = $region12
      $region11: #{tpu_custom_call.1} parent=5 // pred_region
        %s157 = ssub.s32 %s16, 1
        // Predicated region
        $region13: #{tpu_custom_call.1} parent=11 // pred_check
          %p158 = pneg %p61
        $region14: #{tpu_custom_call.1} parent=11 // pred_check_branch
          %160 = sbr.rel (%p158) target = $region16
        $region15: #{tpu_custom_call.1} parent=11 // pred_region
          %s161 = smul.u32 2, %s26
          %s163 = ssub.s32 128, 128
          %164 = vsyncadd [#allocation5], %s163
          %s165 = smul.addr %s161, 64
          %s166 = scalar_lea.hbm %s0, %s165
          %s167 = sshll.u32 [#allocation4], 4
          %s168 = int_to_ptr.vmem [resolvable:$true] %s167
          %173 = dma.hbm_to_vmem [thread:$0]  %s166, 128, %s168, [#allocation5], 64, 64, 4
        $region16: #{tpu_custom_call.1} parent=11 // pred_fallthru
          _
      $region12: #{tpu_custom_call.1} parent=5 // pred_fallthru
        _
      %p174 = scmp.lt.s32.totalorder %s16, 8
      // Predicated region
      $region17: #{tpu_custom_call.1} parent=5 // pred_check
        %p175 = pneg %p174
      $region18: #{tpu_custom_call.1} parent=5 // pred_check_branch
        %177 = sbr.rel (%p175) target = $region20
      $region19: #{tpu_custom_call.1} parent=5 // pred_region
        // Predicated region
        $region21: #{tpu_custom_call.1} parent=19 // pred_check
          %p178 = pneg %p81
        $region22: #{tpu_custom_call.1} parent=19 // pred_check_branch
          %180 = sbr.rel (%p178) target = $region24
        $region23: #{tpu_custom_call.1} parent=19 // pred_region
          %s181 = sand.u32 %s71, 1
          %s182 = scalar_lea.sflag [#allocation8], %s181
          %s183 = sand.u32 %s71, 1
          %s184 = smul.addr %s183, 16
          %s185 = scalar_lea.vmem [#allocation7], %s184
          %s187 = ssub.s32 256, 256
          %188 = vsyncadd %s182, %s187
          %s189 = smul.addr %s25, 64
          %s190 = scalar_lea.hbm %s1, %s189
          %s191 = sshll.u32 %s185, 4
          %s192 = int_to_ptr.vmem [resolvable:$true] %s191
          %197 = dma.hbm_to_vmem [thread:$0]  %s190, 256, %s192, %s182, 256, 64, 4
        $region24: #{tpu_custom_call.1} parent=19 // pred_fallthru
          _
        // Predicated region
        $region25: #{tpu_custom_call.1} parent=19 // pred_check
          %p198 = pneg %p107
        $region26: #{tpu_custom_call.1} parent=19 // pred_check_branch
          %200 = sbr.rel (%p198) target = $region28
        $region27: #{tpu_custom_call.1} parent=19 // pred_region
          %p201 = scmp.lt.s32.totalorder %s25, 3
          %s202 = scalar_select %p201, %s25, 3
          %s203 = scalar_lea.vmem %s2, %s202
        $region28: #{tpu_custom_call.1} parent=19 // pred_fallthru
          _
      $region20: #{tpu_custom_call.1} parent=5 // pred_fallthru
        _
      %p204 = scmp.le.s32.totalorder 1, %s16
      %p205 = scmp.lt.s32.totalorder %s16, 9
      %p206 = pnand %p204, %p205
      %p207 = pneg %p206
      // Predicated region
      $region29: #{tpu_custom_call.1} parent=5 // pred_check
        _
      $region30: #{tpu_custom_call.1} parent=5 // pred_check_branch
        %209 = sbr.rel (%p206) target = $region32
      $region31: #{tpu_custom_call.1} parent=5 // pred_region
        %s210 = ssub.s32 %s16, 1
        // Predicated region
        $region33: #{tpu_custom_call.1} parent=31 // pred_check
          %p211 = pneg %p61
        $region34: #{tpu_custom_call.1} parent=31 // pred_check_branch
          %213 = sbr.rel (%p211) target = $region36
        $region35: #{tpu_custom_call.1} parent=31 // pred_region
          %214 = dma.done [#allocation5], 128
        $region36: #{tpu_custom_call.1} parent=31 // pred_fallthru
          _
        %s215 = sand.u32 %s74, 1
        %s216 = scalar_lea.sflag [#allocation8], %s215
        %s217 = sand.u32 %s74, 1
        %s218 = smul.addr %s217, 16
        %s219 = scalar_lea.vmem [#allocation7], %s218
        // Predicated region
        $region37: #{tpu_custom_call.1} parent=31 // pred_check
          %p220 = pneg %p87
        $region38: #{tpu_custom_call.1} parent=31 // pred_check_branch
          %222 = sbr.rel (%p220) target = $region40
        $region39: #{tpu_custom_call.1} parent=31 // pred_region
          %223 = dma.done %s216, 256
        $region40: #{tpu_custom_call.1} parent=31 // pred_fallthru
          _
        %p224 = pneg %p61
        %p225 = pneg %p58
        %s226 = sand.u32 %s74, 1
        %s227 = scalar_lea.sflag [#allocation8], %s226
        %s228 = sand.u32 %s74, 1
        %s229 = smul.addr %s228, 16
        %s230 = scalar_lea.vmem [#allocation7], %s229
        %p231 = pneg %p87
        %p232 = pneg %p84
        %p233 = scmp.lt.s32.totalorder %s28, 3
        %s234 = scalar_select %p233, %s28, 3
        %s235 = scalar_lea.vmem %s2, %s234
        %p236 = pneg %p113
        %p237 = pneg %p110
        %p238 = pneg %p143
        %p239 = pneg %p140
        %s240 = sand.u32 %s130, 1
        %s241 = scalar_lea.sflag [#allocation6], %s240
        %s242 = sand.u32 %s130, 1
        %s243 = smul.addr %s242, 16
        %s244 = scalar_lea.vmem [#allocation9], %s243
        %s245 = smul.u32 2, %s26
        %p246 = scmp.lt.s32.totalorder %s28, 3
        %s247 = scalar_select %p246, %s28, 3
        %s248 = scalar_lea.vmem %s2, %s247
        %s249 = smul.u32 %s28, %s27
        %s250 = smul.u32 2, %s26
        %p252 = scmp.eq.s32.totalorder %s27, 0
        %p253 = scmp.eq.s32.totalorder %s28, 0
        %p254 = pnand %p252, %p253
        %p255 = pneg %p254
        // Predicated region
        $region41: #{tpu_custom_call.1} parent=31 // pred_check
          _
        $region42: #{tpu_custom_call.1} parent=31 // pred_check_branch
          %257 = sbr.rel (%p254) target = $region44
        $region43: #{tpu_custom_call.1} parent=31 // pred_region
          %vm258 = vcmask 7168
          %259 = vst.msk [vmem:[#allocation2] sm:$0xff] %vm258, -inf
          %260 = vst.msk [vmem:[#allocation2 + $0x8] sm:$0xff] %vm258, -inf
          %261 = vst.msk [vmem:[#allocation3] sm:$0xff] %vm258, 0.0
          %262 = vst.msk [vmem:[#allocation3 + $0x8] sm:$0xff] %vm258, 0.0
        $region44: #{tpu_custom_call.1} parent=31 // pred_fallthru
          _
        %v263 = vld [vmem:[#allocation4] sm:$0xf]
        %v264 = vld [vmem:[#allocation4 + $0x4] sm:$0xf]
        %v265 = vld [vmem:[%s219] sm:$0xf]
        %v266 = vld [vmem:[%s219 + $0x4] sm:$0xf]
        %v267 = vld [vmem:[%s219 + $0x8] sm:$0xf]
        %v268 = vld [vmem:[%s219 + $0xc] sm:$0xf]
        %v269 = vld [vmem:[%s248] sm:$0x1]
        %v271 = vlaneseq
        %v272 = vshrl.u32 %v271, 7
        %v273 = vsub.s32 0, %v272
        %v274 = vrot.slane %v269, %v273
        %v278 = vunpack.c.l.b16 %v263
        %v279 = vunpack.c.l.b16 %v264
        %v280 = vpack.c.b16 %v279, %v278
        %v285 = vunpack.c.l.b16 %v265
        %v286 = vunpack.c.l.b16 %v266
        %v287 = vunpack.c.l.b16 %v267
        %v288 = vunpack.c.l.b16 %v268
        %v289 = vpack.c.b16 %v286, %v285
        %v290 = vpack.c.b16 %v288, %v287
        %vm293 = vcmask 261120
        %v295 = vsel %vm293, %v280, 0
        %297 = vmatprep.subr.bf16.mxu0 0
        %298 = vmatpush1.bf16.msra.mxu0 %v289
        %299 = vmatprep.subr.bf16.mxu0 0
        %300 = vmatpush1.bf16.msra.mxu0 %v290
        %301 = vmatprep.subr.bf16.mxu0 0
        %302 = vmatpush1.bf16.msra.mxu0 0
        %303 = vmatprep.subr.bf16.mxu0 0
        %304 = vmatpush1.bf16.msra.mxu0 0
        %305 = vmatprep.subr.bf16.mxu0 0
        %306 = vmatpush1.bf16.msra.mxu0 0
        %307 = vmatprep.subr.bf16.mxu0 0
        %308 = vmatpush1.bf16.msra.mxu0 0
        %309 = vmatprep.subr.bf16.mxu0 0
        %310 = vmatpush1.bf16.msra.mxu0 0
        %311 = vmatprep.subr.bf16.mxu0 0
        %312 = vmatpush1.bf16.msra.mxu0 0
        %313 = vmatprep.subr.bf16.mxu0 0
        %314 = vmatpush1.bf16.msra.mxu0 0
        %315 = vmatprep.subr.bf16.mxu0 0
        %316 = vmatpush1.bf16.msra.mxu0 0
        %317 = vmatprep.subr.bf16.mxu0 0
        %318 = vmatpush1.bf16.msra.mxu0 0
        %319 = vmatprep.subr.bf16.mxu0 0
        %320 = vmatpush1.bf16.msra.mxu0 0
        %321 = vmatprep.subr.bf16.mxu0 0
        %322 = vmatpush1.bf16.msra.mxu0 0
        %323 = vmatprep.subr.bf16.mxu0 0
        %324 = vmatpush1.bf16.msra.mxu0 0
        %325 = vmatprep.subr.bf16.mxu0 0
        %326 = vmatpush1.bf16.msra.mxu0 0
        %327 = vmatprep.subr.bf16.mxu0 0
        %328 = vmatpush1.bf16.msra.mxu0 0
        %329 = vmatprep.mubr.bf16.mxu0 0
        %330 = vmatmul.mubr.bf16.gmra.mrb[0].mxu0 %v295
        %v331 = vpop.f32.mrb[0].mxu0
        %v332 = vadd.f32 %v274, %v331
        %v333 = vpop.f32.mrb[0].mxu0
        %v334 = vpop.f32.mrb[0].mxu0
        %v335 = vadd.f32 %v274, %v334
        %v336 = vpop.f32.mrb[0].mxu0
        %337 = vdwg.mxu0
        // Predicated region
        $region45: #{tpu_custom_call.1} parent=31 // pred_check
          %p338 = pneg %p252
        $region46: #{tpu_custom_call.1} parent=31 // pred_check_branch
          %340 = sbr.rel (%p338) target = $region48
        $region47: #{tpu_custom_call.1} parent=31 // pred_region
          %v341 = vld [vmem:[#allocation2] sm:$0xff]
          %v342 = vld [vmem:[#allocation2 + $0x8] sm:$0xff]
          %343 = vmax.xlane.f32.xlu0 %v332
          %v344 = vpop.xlane.xlu0 %343
          %345 = vmax.xlane.f32.xlu0 %v335
          %v346 = vpop.xlane.xlu0 %345
          %v347 = vmax.f32 %v341, %v344
          %v348 = vmax.f32 %v342, %v346
          %v349 = vld [vmem:[#allocation3] sm:$0xff]
          %v350 = vld [vmem:[#allocation3 + $0x8] sm:$0xff]
          %v351 = vsub.f32 %v341, %v347
          %v352 = vsub.f32 %v342, %v348
          %v353 = vmul.f32 %v351, 1.442695
          %v354 = vpow.pop %v353
          %v355 = vmul.f32 %v352, 1.442695
          %v356 = vpow.pop %v355
          %v357 = vmul.f32 %v349, %v354
          %v358 = vmul.f32 %v350, %v356
          %360 = vset.pattern.permute.xlu0 0
          %361 = vperm.xlu0 %360, %v347
          %v362 = vpop.permute.xlu0 %361
          %365 = vset.pattern.permute.xlu0 0
          %366 = vperm.xlu0 %365, %v348
          %v367 = vpop.permute.xlu0 %366
          %v369 = vsub.f32 %v332, %v362
          %v370 = vsub.f32 %v335, %v367
          %v371 = vmul.f32 %v369, 1.442695
          %v372 = vpow.pop %v371
          %v373 = vmul.f32 %v370, 1.442695
          %v374 = vpow.pop %v373
          %375 = vadd.xlane.f32.xlu0 %v372
          %v376 = vpop.xlane.xlu0 %375
          %377 = vadd.xlane.f32.xlu0 %v374
          %v378 = vpop.xlane.xlu0 %377
          %v379 = vadd.f32 %v357, %v376
          %v380 = vadd.f32 %v358, %v378
          %vm381 = vcmask 7168
          %382 = vst.msk [vmem:[#allocation3] sm:$0xff] %vm381, %v379
          %383 = vst.msk [vmem:[#allocation3 + $0x8] sm:$0xff] %vm381, %v380
          %384 = vst.msk [vmem:[#allocation2] sm:$0xff] %vm381, %v347
          %385 = vst.msk [vmem:[#allocation2 + $0x8] sm:$0xff] %vm381, %v348
        $region48: #{tpu_custom_call.1} parent=31 // pred_fallthru
          _
        %p386 = scmp.eq.s32.totalorder %s27, 1
        // Predicated region
        $region49: #{tpu_custom_call.1} parent=31 // pred_check
          %p387 = pneg %p386
        $region50: #{tpu_custom_call.1} parent=31 // pred_check_branch
          %389 = sbr.rel (%p387) target = $region52
        $region51: #{tpu_custom_call.1} parent=31 // pred_region
          %v390 = vld [vmem:[#allocation2] sm:$0xff]
          %v391 = vld [vmem:[#allocation2 + $0x8] sm:$0xff]
          %v392 = vld [vmem:[#allocation3] sm:$0xff]
          %v393 = vld [vmem:[#allocation3 + $0x8] sm:$0xff]
          %v394 = vlog2.pop %v392
          %v395 = vmul.f32 %v394, 0.6931472
          %v396 = vlog2.pop %v393
          %v397 = vmul.f32 %v396, 0.6931472
          %v398 = vadd.f32 %v390, %v395
          %v399 = vadd.f32 %v391, %v397
          %401 = vset.pattern.permute.xlu0 0
          %402 = vperm.xlu0 %401, %v398
          %v403 = vpop.permute.xlu0 %402
          %406 = vset.pattern.permute.xlu0 0
          %407 = vperm.xlu0 %406, %v399
          %v408 = vpop.permute.xlu0 %407
          %v410 = vsub.f32 %v332, %v403
          %v411 = vsub.f32 %v335, %v408
          %412 = vst [vmem:[%s244] sm:$0xff] %v410
          %413 = vst [vmem:[%s244 + $0x8] sm:$0xff] %v411
        $region52: #{tpu_custom_call.1} parent=31 // pred_fallthru
          _
        %s414 = sand.u32 %s130, 1
        %s415 = scalar_lea.sflag [#allocation6], %s414
        %s416 = sand.u32 %s130, 1
        %s417 = smul.addr %s416, 16
        %s418 = scalar_lea.vmem [#allocation9], %s417
        // Predicated region
        $region53: #{tpu_custom_call.1} parent=31 // pred_check
          %p419 = pneg %p140
        $region54: #{tpu_custom_call.1} parent=31 // pred_check_branch
          %421 = sbr.rel (%p419) target = $region56
        $region55: #{tpu_custom_call.1} parent=31 // pred_region
          %s422 = smul.u32 %s28, %s27
          %s423 = smul.u32 2, %s26
          %s425 = ssub.s32 256, 256
          %426 = vsyncadd %s415, %s425
          %s427 = smul.addr %s423, 4
          %s428 = sadd.s32 %s422, %s427
          %s429 = smul.addr %s428, 128
          %s430 = scalar_lea.hbm %s3, %s429
          %s431 = sshll.u32 %s418, 4
          %s432 = int_to_ptr.vmem [resolvable:$true] %s431
          %437 = dma.vmem_to_hbm [thread:$0]  %s432, 256, %s430, %s415, 128, 512, 8
        $region56: #{tpu_custom_call.1} parent=31 // pred_fallthru
          _
      $region32: #{tpu_custom_call.1} parent=5 // pred_fallthru
        _
      %p438 = scmp.le.s32.totalorder 2, %s16
      // Predicated region
      $region57: #{tpu_custom_call.1} parent=5 // pred_check
        %p439 = pneg %p438
      $region58: #{tpu_custom_call.1} parent=5 // pred_check_branch
        %441 = sbr.rel (%p439) target = $region60
      $region59: #{tpu_custom_call.1} parent=5 // pred_region
        %s442 = ssub.s32 %s16, 2
        // Predicated region
        $region61: #{tpu_custom_call.1} parent=59 // pred_check
          %p443 = pneg %p146
        $region62: #{tpu_custom_call.1} parent=59 // pred_check_branch
          %445 = sbr.rel (%p443) target = $region64
        $region63: #{tpu_custom_call.1} parent=59 // pred_region
          %s446 = sand.u32 %s131, 1
          %s447 = scalar_lea.sflag [#allocation6], %s446
          %s448 = sand.u32 %s131, 1
          %s449 = smul.addr %s448, 16
          %s450 = scalar_lea.vmem [#allocation9], %s449
          %451 = dma.done %s447, 256
        $region64: #{tpu_custom_call.1} parent=59 // pred_fallthru
          _
      $region60: #{tpu_custom_call.1} parent=5 // pred_fallthru
        _
    $region6: #{tpu_custom_call.1} parent=1 // loop_footer
      %s20 = sadd.s32 1, %s16
    $region7: #{tpu_custom_call.1} parent=1 // loop_footer_branch
      %15 = sbr.rel target = $region3
    $region8: #{tpu_custom_call.1} parent=1 // loop_exit
      _
    %452 = vsyncpa [#allocation5], 1
    %s453 = scalar_lea.sflag [#allocation5], 1
    %454 = vsyncpa %s453, 1
    %455 = vsyncpa [#allocation8], 1
    %s456 = scalar_lea.sflag [#allocation8], 1
    %457 = vsyncpa %s456, 1
    %458 = vsyncpa [#allocation6], 1
    %s459 = scalar_lea.sflag [#allocation6], 1
    %460 = vsyncpa %s459, 1

</llo_original>
